<compile_context>
chip_gen: v7x
topology: tpu7x:2x2x1
jax: 0.10.0
libtpu: 0.0.40
codegen_flags: <defaults>
</compile_context>

<pallas_src>
import jax
import jax.numpy as jnp
from jax.experimental import pallas as pl
from jax.experimental.pallas import tpu as pltpu


# Per-step VMEM at tile_n=8192 is ~6 MiB (in/out double-buffered + f32
# intermediates), safely inside v7x's 32 MiB scoped default and far under
# v5e/v6e's headroom.
_MAX_TILE_N = 8192


# ------------------------------- Pallas kernel -------------------------------

def _mlp_pe_kernel(x_ref, w1_ref, b1_ref, w2_ref, b2_ref, w3_ref, b3_ref, o_ref):
    """Fused pointwise MLP in NCW orientation.

    x_ref:  (1, C_in, T)  f32       input points (channels x points)
    w1_ref: (H1, C_in)    f32       layer-1 weight (transposed conv weight)
    b1_ref: (H1, 1)       f32
    w2_ref: (H2, H1)      bf16/f32  layer-2 weight with BN1 folded in
    b2_ref: (H2, 1)       f32
    w3_ref: (C_out, H2)   bf16/f32  output weight with BN2 folded in
    b3_ref: (C_out, 1)    f32
    o_ref:  (1, C_out, T)           lane-dense output tile (points on lanes)
    """
    x = x_ref[0, :, :].astype(jnp.float32)        # (C_in, T)
    w1 = w1_ref[...]                              # (H1, C_in)
    c_in = w1.shape[1]

    # ---- layer 1: Conv1d(k=1) + ReLU -------------------------------------
    # K = C_in (=3) would waste the MXU; use VPU broadcast FMAs (outer
    # products (H1,1)*(1,T)) which overlap with the MXU work below.
    h = b1_ref[...] + w1[:, 0:1] * x[0:1, :]      # (H1, T)
    for k in range(1, c_in):                      # static, tiny trip count
        h = h + w1[:, k:k + 1] * x[k:k + 1, :]
    h = jnp.maximum(h, 0.0)

    # ---- layer 2: Conv1d(k=1) (BN1 pre-folded) + ReLU ---------------------
    md = w2_ref.dtype                             # MXU operand dtype (default bf16)
    h = jnp.dot(w2_ref[...], h.astype(md),
                preferred_element_type=jnp.float32) + b2_ref[...]
    h = jnp.maximum(h, 0.0)

    # ---- output layer: Conv1d(k=1) (BN2 pre-folded) -----------------------
    o = jnp.dot(w3_ref[...], h.astype(md),
                preferred_element_type=jnp.float32) + b3_ref[...]
    o_ref[0, :, :] = o.astype(o_ref.dtype)


# --------------------------------- wrapper -----------------------------------

def _pick_tile_n(N, B, tile_n):
    """Point-axis tile: lane-dense multiple of 128 (or full extent), capped for
    v7x VMEM, and split so the parallel grid has >=2 steps when B == 1."""
    tile_n = min(int(tile_n), _MAX_TILE_N)
    if tile_n >= N:
        tile_n = N
    else:
        tile_n = max(128, (tile_n // 128) * 128)
    # v7x megacore: a 1-step grid leaves one TensorCore idle.  If the batch
    # axis cannot provide the second step, split the point axis (lane-densely).
    if B == 1 and tile_n >= N and N >= 256:
        tile_n = max(128, (pl.cdiv(N, 2) // 128) * 128)
    return tile_n


def mlp_positional_encoding(kpts, side_info, params, *, tile_n=_MAX_TILE_N,
                            compute_dtype=jnp.bfloat16, out_dtype=jnp.float32):
    """JAX wrapper reproducing MLPPositionalEncoding.forward (eval mode).

    kpts:          (B, N, 2)  float32
    side_info:     (B, N, S)  float32
    compute_dtype: dtype of the layer-2/3 MXU operands (weights AND activations);
                   bf16 by default on every generation (f32 MXU is multi-pass,
                   and v7x has no f32 MXU path).  Accumulation is always f32.
    out_dtype:     output dtype; pass jnp.bfloat16 to halve the dominant HBM
                   write on memory-bound v5e/v6e if the consumer tolerates it.
    returns:       (B, output_size, N) in out_dtype  (PyTorch NCW layout)
    """
    B, N, _ = kpts.shape

    # torch.cat([kpts, side_info], -1).transpose(1, 2) -- input is only C_in=3
    # channels, so this staging pass is small relative to the output traffic.
    x = jnp.concatenate([kpts, side_info], axis=-1)          # (B, N, C_in)
    x_ncw = jnp.transpose(x, (0, 2, 1))                      # (B, C_in, N)
    C_in = x_ncw.shape[1]

    (w1, b1, s1, t1, w2, b2, s2, t2, w3, b3) = params
    H1, H2, C_out = w1.shape[1], w2.shape[1], w3.shape[1]

    # Fold eval-mode BatchNorm (scale s, shift t) into the NEXT layer:
    #   (relu(a1)*s1 + t1) @ w2 + b2 == relu(a1) @ (s1.T * w2) + (b2 + t1 @ w2)
    w2f = w2 * s1.reshape(H1, 1)
    b2f = b2 + t1 @ w2
    w3f = w3 * s2.reshape(H2, 1)
    b3f = b3 + t2 @ w3

    # NCW (transposed) parameter layout for the kernel.  Only the MXU matmul
    # operands are narrowed; biases and layer 1 stay f32.
    w1t = jnp.asarray(w1.T, jnp.float32)                     # (H1, C_in)
    b1t = jnp.asarray(b1.T, jnp.float32)                     # (H1, 1)
    w2t = jnp.asarray(w2f.T, compute_dtype)                  # (H2, H1)
    b2t = jnp.asarray(b2f.T, jnp.float32)                    # (H2, 1)
    w3t = jnp.asarray(w3f.T, compute_dtype)                  # (C_out, H2)
    b3t = jnp.asarray(b3f.T, jnp.float32)                    # (C_out, 1)

    tile_n = _pick_tile_n(N, B, tile_n)
    grid = (B, pl.cdiv(N, tile_n))                           # ragged tail clipped

    full = lambda shape: pl.BlockSpec(shape, lambda b, j: (0,) * len(shape))

    out = pl.pallas_call(
        _mlp_pe_kernel,
        out_shape=jax.ShapeDtypeStruct((B, C_out, N), out_dtype),
        grid_spec=pltpu.PrefetchScalarGridSpec(
            num_scalar_prefetch=0,
            grid=grid,
            in_specs=[
                pl.BlockSpec((1, C_in, tile_n), lambda b, j: (b, 0, j)),
                full((H1, C_in)), full((H1, 1)),
                full((H2, H1)), full((H2, 1)),
                full((C_out, H2)), full((C_out, 1)),
            ],
            out_specs=pl.BlockSpec((1, C_out, tile_n), lambda b, j: (b, 0, j)),
        ),
        compiler_params=pltpu.CompilerParams(
            dimension_semantics=("parallel", "parallel")),
    )(x_ncw, w1t, b1t, w2t, b2t, w3t, b3t)

    return out                                               # (B, C_out, N)


# --------------------------- parameter construction ---------------------------

def init_params(key, c_in, h1, h2, c_out, eps=1e-5):
    """Deterministic synthetic params matching FeedForwardNet(c_in, h1, h2, c_out)."""
    ks = jax.random.split(key, 10)

    def conv_w(k, cin, cout):
        # PyTorch Conv1d weight is (cout, cin, 1); stored here in (cin, cout) matmul form.
        bound = 1.0 / jnp.sqrt(cin)
        return jax.random.uniform(k, (cin, cout), jnp.float32, -bound, bound)

    def conv_b(k, cin, cout):
        bound = 1.0 / jnp.sqrt(cin)
        return jax.random.uniform(k, (1, cout), jnp.float32, -bound, bound)

    w1, b1 = conv_w(ks[0], c_in, h1), conv_b(ks[1], c_in, h1)
    w2, b2 = conv_w(ks[2], h1, h2), conv_b(ks[3], h1, h2)
    w3, b3 = conv_w(ks[4], h2, c_out), conv_b(ks[5], h2, c_out)

    def bn_fold(kg, kb, c):
        gamma = 1.0 + 0.1 * jax.random.normal(kg, (1, c), jnp.float32)
        beta = 0.1 * jax.random.normal(kb, (1, c), jnp.float32)
        running_mean = jnp.zeros((1, c), jnp.float32)   # PyTorch default init
        running_var = jnp.ones((1, c), jnp.float32)     # PyTorch default init
        scale = gamma / jnp.sqrt(running_var + eps)
        shift = beta - running_mean * scale
        return scale, shift

    s1, t1 = bn_fold(ks[6], ks[7], h1)
    s2, t2 = bn_fold(ks[8], ks[9], h2)

    return (w1, b1, s1, t1, w2, b2, s2, t2, w3, b3)


def reference_forward(kpts, side_info, params):
    """Pure-JAX reference (unfolded BN, f32) for numerical checking."""
    (w1, b1, s1, t1, w2, b2, s2, t2, w3, b3) = params
    x = jnp.concatenate([kpts, side_info], axis=-1)            # (B, N, C_in)
    h = jnp.maximum(x @ w1 + b1, 0.0) * s1 + t1
    h = jnp.maximum(h @ w2 + b2, 0.0) * s2 + t2
    o = h @ w3 + b3                                            # (B, N, C_out)
    return o.transpose(0, 2, 1)                                # (B, C_out, N)


# ------------------------------------ main ------------------------------------

if __name__ == "__main__":
    # module config: side_info_size=1, hidden_layers_sizes=[32, 64], output_size=32
    SIDE = 1
    HIDDEN = (32, 64)
    OUT = 32
    C_IN = SIDE + 2

    key = jax.random.PRNGKey(0)
    k1, k2, k3, k4, k5 = jax.random.split(key, 5)
    params = init_params(k3, C_IN, HIDDEN[0], HIDDEN[1], OUT)

    # Config A: B=2, N a multiple of 128 (no ragged tail, per review item #8).
    # tile_n clamps to N -> grid (2, 1): >=2 parallel steps for v7x megacore.
    B, N = 2, 512
    kpts = jax.random.normal(k1, (B, N, 2), jnp.float32)
    side_info = jax.random.normal(k2, (B, N, SIDE), jnp.float32)
    ref = reference_forward(kpts, side_info, params)

    # Default path: bf16 MXU operands (all generations), f32 output.
    out = mlp_positional_encoding(kpts, side_info, params)
    out = jax.block_until_ready(out)
    assert out.shape == (B, OUT, N), out.shape
    assert jnp.allclose(out, ref, atol=1e-1, rtol=1e-1), "bf16-compute mismatch vs reference"

    # Full-f32 path (tight numerical check of the folded-BN fused kernel).
    out_f32 = mlp_positional_encoding(kpts, side_info, params, compute_dtype=jnp.float32)
    out_f32 = jax.block_until_ready(out_f32)
    assert jnp.allclose(out_f32, ref, atol=1e-4, rtol=1e-4), "f32 mismatch vs reference"

    # Config B: B=1 -> point axis auto-split into two tiles (grid (1, 2)) so
    # both v7x TensorCores get work; bf16 output halves the dominant HBM write.
    B2, N2 = 1, 1024
    kpts2 = jax.random.normal(k4, (B2, N2, 2), jnp.float32)
    side2 = jax.random.normal(k5, (B2, N2, SIDE), jnp.float32)
    ref2 = reference_forward(kpts2, side2, params)
    out2 = mlp_positional_encoding(kpts2, side2, params, out_dtype=jnp.bfloat16)
    out2 = jax.block_until_ready(out2)
    assert out2.shape == (B2, OUT, N2), out2.shape
    assert out2.dtype == jnp.bfloat16
    assert jnp.allclose(out2.astype(jnp.float32), ref2, atol=2e-1, rtol=2e-1), \
        "bf16-output mismatch vs reference"

    print("KERNEL_OK")
</pallas_src>

<mosaic_0001>
module attributes {stable_mosaic.version = 11 : i64} {
  func.func @_mlp_pe_kernel(%arg0: i32, %arg1: i32, %arg2: memref<1x3x512xf32, #tpu.memory_space<vmem>>, %arg3: memref<32x3xf32, #tpu.memory_space<vmem>>, %arg4: memref<32x1xf32, #tpu.memory_space<vmem>>, %arg5: memref<64x32xbf16, #tpu.memory_space<vmem>>, %arg6: memref<64x1xf32, #tpu.memory_space<vmem>>, %arg7: memref<32x64xbf16, #tpu.memory_space<vmem>>, %arg8: memref<32x1xf32, #tpu.memory_space<vmem>>, %arg9: memref<1x32x512xf32, #tpu.memory_space<vmem>>) attributes {dimension_semantics = [#tpu.dimension_semantics<parallel>, #tpu.dimension_semantics<parallel>], iteration_bounds = array<i64: 2, 1>, scalar_prefetch = 0 : i64, scratch_operands = 0 : i64, tpu.core_type = #tpu.core_type<tc>, window_params = [{transform_indices = @transform_0, window_bounds = array<i64: 1, 3, 512>}, {pipeline_mode = #tpu.pipeline_mode<synchronous>, transform_indices = @transform_1, window_bounds = array<i64: 32, 3>}, {pipeline_mode = #tpu.pipeline_mode<synchronous>, transform_indices = @transform_2, window_bounds = array<i64: 32, 1>}, {pipeline_mode = #tpu.pipeline_mode<synchronous>, transform_indices = @transform_3, window_bounds = array<i64: 64, 32>}, {pipeline_mode = #tpu.pipeline_mode<synchronous>, transform_indices = @transform_4, window_bounds = array<i64: 64, 1>}, {pipeline_mode = #tpu.pipeline_mode<synchronous>, transform_indices = @transform_5, window_bounds = array<i64: 32, 64>}, {pipeline_mode = #tpu.pipeline_mode<synchronous>, transform_indices = @transform_6, window_bounds = array<i64: 32, 1>}, {transform_indices = @transform_7, window_bounds = array<i64: 1, 32, 512>}]} {
    %c0 = arith.constant 0 : index
    %c0_0 = arith.constant 0 : index
    %c0_1 = arith.constant 0 : index
    %0 = vector.load %arg2[%c0, %c0_0, %c0_1] : memref<1x3x512xf32, #tpu.memory_space<vmem>>, vector<1x3x512xf32>
    %1 = vector.shape_cast %0 : vector<1x3x512xf32> to vector<3x512xf32>
    %c0_2 = arith.constant 0 : index
    %c0_3 = arith.constant 0 : index
    %2 = vector.load %arg3[%c0_2, %c0_3] : memref<32x3xf32, #tpu.memory_space<vmem>>, vector<32x3xf32>
    %c0_4 = arith.constant 0 : index
    %c0_5 = arith.constant 0 : index
    %3 = vector.load %arg4[%c0_4, %c0_5] : memref<32x1xf32, #tpu.memory_space<vmem>>, vector<32x1xf32>
    %4 = vector.extract_strided_slice %2 {offsets = [0, 0], sizes = [32, 1], strides = [1, 1]} : vector<32x3xf32> to vector<32x1xf32>
    %5 = vector.extract_strided_slice %1 {offsets = [0, 0], sizes = [1, 512], strides = [1, 1]} : vector<3x512xf32> to vector<1x512xf32>
    %6 = vector.broadcast %4 : vector<32x1xf32> to vector<32x512xf32>
    %7 = vector.broadcast %5 : vector<1x512xf32> to vector<32x512xf32>
    %8 = arith.mulf %6, %7 : vector<32x512xf32>
    %9 = vector.broadcast %3 : vector<32x1xf32> to vector<32x512xf32>
    %10 = arith.addf %9, %8 : vector<32x512xf32>
    %11 = vector.extract_strided_slice %2 {offsets = [0, 1], sizes = [32, 1], strides = [1, 1]} : vector<32x3xf32> to vector<32x1xf32>
    %12 = vector.extract_strided_slice %1 {offsets = [1, 0], sizes = [1, 512], strides = [1, 1]} : vector<3x512xf32> to vector<1x512xf32>
    %13 = vector.broadcast %11 : vector<32x1xf32> to vector<32x512xf32>
    %14 = vector.broadcast %12 : vector<1x512xf32> to vector<32x512xf32>
    %15 = arith.mulf %13, %14 : vector<32x512xf32>
    %16 = arith.addf %10, %15 : vector<32x512xf32>
    %17 = vector.extract_strided_slice %2 {offsets = [0, 2], sizes = [32, 1], strides = [1, 1]} : vector<32x3xf32> to vector<32x1xf32>
    %18 = vector.extract_strided_slice %1 {offsets = [2, 0], sizes = [1, 512], strides = [1, 1]} : vector<3x512xf32> to vector<1x512xf32>
    %19 = vector.broadcast %17 : vector<32x1xf32> to vector<32x512xf32>
    %20 = vector.broadcast %18 : vector<1x512xf32> to vector<32x512xf32>
    %21 = arith.mulf %19, %20 : vector<32x512xf32>
    %22 = arith.addf %16, %21 : vector<32x512xf32>
    %cst = arith.constant 0.000000e+00 : f32
    %23 = vector.broadcast %cst : f32 to vector<32x512xf32>
    %24 = arith.maximumf %22, %23 : vector<32x512xf32>
    %c0_6 = arith.constant 0 : index
    %c0_7 = arith.constant 0 : index
    %25 = vector.load %arg5[%c0_6, %c0_7] : memref<64x32xbf16, #tpu.memory_space<vmem>>, vector<64x32xbf16>
    %26 = arith.truncf %24 : vector<32x512xf32> to vector<32x512xbf16>
    %cst_8 = arith.constant dense<0.000000e+00> : vector<64x512xf32>
    %27 = tpu.matmul %25, %26, %cst_8 {dimension_numbers = #tpu.dot_dimension_numbers<[1], [0], [0], [1], [0, 0, 1, 1], [], []>} : vector<64x32xbf16>, vector<32x512xbf16>, vector<64x512xf32> -> vector<64x512xf32>
    %c0_9 = arith.constant 0 : index
    %c0_10 = arith.constant 0 : index
    %28 = vector.load %arg6[%c0_9, %c0_10] : memref<64x1xf32, #tpu.memory_space<vmem>>, vector<64x1xf32>
    %29 = vector.broadcast %28 : vector<64x1xf32> to vector<64x512xf32>
    %30 = arith.addf %27, %29 : vector<64x512xf32>
    %cst_11 = arith.constant 0.000000e+00 : f32
    %31 = vector.broadcast %cst_11 : f32 to vector<64x512xf32>
    %32 = arith.maximumf %30, %31 : vector<64x512xf32>
    %c0_12 = arith.constant 0 : index
    %c0_13 = arith.constant 0 : index
    %33 = vector.load %arg7[%c0_12, %c0_13] : memref<32x64xbf16, #tpu.memory_space<vmem>>, vector<32x64xbf16>
    %34 = arith.truncf %32 : vector<64x512xf32> to vector<64x512xbf16>
    %cst_14 = arith.constant dense<0.000000e+00> : vector<32x512xf32>
    %35 = tpu.matmul %33, %34, %cst_14 {dimension_numbers = #tpu.dot_dimension_numbers<[1], [0], [0], [1], [0, 0, 1, 1], [], []>} : vector<32x64xbf16>, vector<64x512xbf16>, vector<32x512xf32> -> vector<32x512xf32>
    %c0_15 = arith.constant 0 : index
    %c0_16 = arith.constant 0 : index
    %36 = vector.load %arg8[%c0_15, %c0_16] : memref<32x1xf32, #tpu.memory_space<vmem>>, vector<32x1xf32>
    %37 = vector.broadcast %36 : vector<32x1xf32> to vector<32x512xf32>
    %38 = arith.addf %35, %37 : vector<32x512xf32>
    %c0_17 = arith.constant 0 : index
    %c0_18 = arith.constant 0 : index
    %c0_19 = arith.constant 0 : index
    %39 = vector.load %arg9[%c0_17, %c0_18, %c0_19] : memref<1x32x512xf32, #tpu.memory_space<vmem>>, vector<1x32x512xf32>
    %40 = vector.shape_cast %39 : vector<1x32x512xf32> to vector<32x512xf32>
    %41 = vector.shape_cast %38 : vector<32x512xf32> to vector<1x32x512xf32>
    tpu.vector_store %arg9[%c0_17, %c0_18, %c0_19], %41 {strides = array<i32>} : memref<1x32x512xf32, #tpu.memory_space<vmem>>, vector<1x32x512xf32>,
    return
  }
  func.func @transform_0(%arg0: i32, %arg1: i32) -> (i32, i32, i32) {
    %c0_i32 = arith.constant 0 : i32
    %c0_i32_0 = arith.constant 0 : i32
    return %arg0, %c0_i32, %arg1 : i32, i32, i32
  }
  func.func @transform_1(%arg0: i32, %arg1: i32) -> (i32, i32) {
    %c0_i32 = arith.constant 0 : i32
    %c0_i32_0 = arith.constant 0 : i32
    %c0_i32_1 = arith.constant 0 : i32
    return %c0_i32, %c0_i32_0 : i32, i32
  }
  func.func @transform_2(%arg0: i32, %arg1: i32) -> (i32, i32) {
    %c0_i32 = arith.constant 0 : i32
    %c0_i32_0 = arith.constant 0 : i32
    %c0_i32_1 = arith.constant 0 : i32
    return %c0_i32, %c0_i32_0 : i32, i32
  }
  func.func @transform_3(%arg0: i32, %arg1: i32) -> (i32, i32) {
    %c0_i32 = arith.constant 0 : i32
    %c0_i32_0 = arith.constant 0 : i32
    %c0_i32_1 = arith.constant 0 : i32
    return %c0_i32, %c0_i32_0 : i32, i32
  }
  func.func @transform_4(%arg0: i32, %arg1: i32) -> (i32, i32) {
    %c0_i32 = arith.constant 0 : i32
    %c0_i32_0 = arith.constant 0 : i32
    %c0_i32_1 = arith.constant 0 : i32
    return %c0_i32, %c0_i32_0 : i32, i32
  }
  func.func @transform_5(%arg0: i32, %arg1: i32) -> (i32, i32) {
    %c0_i32 = arith.constant 0 : i32
    %c0_i32_0 = arith.constant 0 : i32
    %c0_i32_1 = arith.constant 0 : i32
    return %c0_i32, %c0_i32_0 : i32, i32
  }
  func.func @transform_6(%arg0: i32, %arg1: i32) -> (i32, i32) {
    %c0_i32 = arith.constant 0 : i32
    %c0_i32_0 = arith.constant 0 : i32
    %c0_i32_1 = arith.constant 0 : i32
    return %c0_i32, %c0_i32_0 : i32, i32
  }
  func.func @transform_7(%arg0: i32, %arg1: i32) -> (i32, i32, i32) {
    %c0_i32 = arith.constant 0 : i32
    %c0_i32_0 = arith.constant 0 : i32
    return %arg0, %c0_i32, %arg1 : i32, i32, i32
  }
}

</mosaic_0001>

<llo_original>
// kernel: tpu_custom_call.1
$region0: #{tpu_custom_call.1}
  #allocation0 [shape = 'u32[]', space=smem, size = 0x4, offset = 0x4, fixed_abs, tag = 'smem constant byte address 0x4 - core index']
  #allocation1 [shape = 'u32[144,128]{1,0:T(1,128)}', space=vmem, size = 0x12000, scoped, tag = 'internal scratch']
  %s0 = inlined_call_operand.vmem [shape: f32[2,3,512], index: 0, kind: input, shape index: {}]
  %s1 = inlined_call_operand.vmem [shape: f32[32,3], index: 1, kind: input, shape index: {}]
  %s2 = inlined_call_operand.vmem [shape: f32[32,1], index: 2, kind: input, shape index: {}]
  %s3 = inlined_call_operand.vmem [shape: bf16[64,32], index: 3, kind: input, shape index: {}]
  %s4 = inlined_call_operand.vmem [shape: f32[64,1], index: 4, kind: input, shape index: {}]
  %s5 = inlined_call_operand.vmem [shape: bf16[32,64], index: 5, kind: input, shape index: {}]
  %s6 = inlined_call_operand.vmem [shape: f32[32,1], index: 6, kind: input, shape index: {}]
  %s7 = inlined_call_operand.hbm [shape: f32[2,32,512], index: 7, kind: output, shape index: {}]
  %s8 = sld [smem:[#allocation0]]
  $region61: #{tpu_custom_call.1} parent=0
    _
  %s10 = ssub.s32 1, %s8
  %s11 = scalar_select 0, %s10, %s8
  $region1: #{tpu_custom_call.1} parent=0
    #allocation2 [shape = 'u8[131072]{0}', space=vmem, size = 0x20000, scoped, tag = 'output window, operand 0']
    #allocation3 [shape = 's32[2]{0}', space=sflag, size = 0x8, scoped, tag = 'scoped memory for tpu_custom_call.1']
    %12 = vsyncpa [#allocation3], 0
    %s13 = scalar_lea.sflag [#allocation3], 1
    %14 = vsyncpa %s13, 0
    loop: start=0, step=1, limit=4
    $region2: #{tpu_custom_call.1} parent=1 // loop_pre_header
      _
    $region3: #{tpu_custom_call.1} parent=1 // loop_header
      %s16 = sphi 0, %s20
      %p17 = scmp.ge.s32.totalorder %s16, 4
      %s23 = sphi 0, %s35
      %s24 = sphi 0, %s31
      %s25 = sphi 0, %s23
      %s26 = sphi 0, %s24
      %s27 = sphi 0, %s25
      %s28 = sphi 0, %s26
      %s40 = sphi 0, %s42
      %s43 = sphi 0, %s40
      %s44 = sphi 0, %s43
      %s60 = sphi 0, %s44
      %s64 = sphi 0, %s64
      %s66 = sphi 0, %s64
      %s67 = sphi 0, %s66
      %s81 = sphi 0, %s67
      %s85 = sphi 0, %s85
      %s87 = sphi 0, %s85
      %s88 = sphi 0, %s87
      %s102 = sphi 0, %s88
      %s106 = sphi 0, %s106
      %s108 = sphi 0, %s106
      %s109 = sphi 0, %s108
      %s123 = sphi 0, %s109
      %s127 = sphi 0, %s127
      %s129 = sphi 0, %s127
      %s130 = sphi 0, %s129
      %s144 = sphi 0, %s130
      %s148 = sphi 0, %s148
      %s150 = sphi 0, %s148
      %s151 = sphi 0, %s150
      %s165 = sphi 0, %s151
      %s169 = sphi 0, %s169
      %s171 = sphi 0, %s169
      %s172 = sphi 0, %s171
      %s186 = sphi 0, %s172
      %s194 = sphi 0, %s196
      %s197 = sphi 0, %s194
      %s198 = sphi 0, %s197
      %s214 = sphi 0, %s198
    $region4: #{tpu_custom_call.1} parent=1 // loop_header_branch
      %19 = sbr.rel (%p17) target = $region8
    $region5: #{tpu_custom_call.1} parent=1 // loop_body
      %s21 = ssub.s32 %s16, 1
      %s22 = ssub.s32 %s16, 2
      %s29 = sadd.s32 1, %s24
      %p30 = scmp.ge.s32.totalorder %s29, 1
      %s31 = scalar_select %p30, 0, %s29
      %s32 = sadd.s32 1, %s23
      %s33 = scalar_select %p30, %s32, %s23
      %p34 = scmp.ge.s32.totalorder %s33, 2
      %s35 = scalar_select %p34, 0, %s33
      %s36 = ssub.s32 %s23, %s35
      %s37 = ssub.s32 %s24, %s31
      %s38 = sor.u32 %s36, %s37
      %p39 = scmp.eq.s32.totalorder %s38, 0
      %s41 = sadd.s32 %s40, 1
      %s42 = scalar_select %p39, %s40, %s41
      %p45 = pneg %p39
      %p46 = scmp.eq.s32.totalorder %s16, 1
      %p47 = por %p45, %p46
      %p48 = scmp.ne.s32.totalorder %s40, %s43
      %p49 = scmp.eq.s32.totalorder %s16, 0
      %p50 = por %p48, %p49
      %p51 = scmp.ne.s32.totalorder %s40, %s43
      %p52 = scmp.eq.s32.totalorder %s21, 1
      %p53 = por %p51, %p52
      %p54 = scmp.ne.s32.totalorder %s43, %s44
      %p55 = scmp.eq.s32.totalorder %s21, 0
      %p56 = por %p54, %p55
      %p57 = scmp.ne.s32.totalorder %s43, %s44
      %p58 = scmp.eq.s32.totalorder %s22, 1
      %p59 = por %p57, %p58
      %p61 = scmp.ne.s32.totalorder %s44, %s60
      %p62 = scmp.eq.s32.totalorder %s22, 0
      %p63 = por %p61, %p62
      %s65 = sadd.s32 %s64, 1
      %p68 = scmp.eq.s32.totalorder %s16, 1
      %p69 = scmp.ne.s32.totalorder %s64, %s66
      %p70 = scmp.eq.s32.totalorder %s16, 0
      %p71 = por %p69, %p70
      %p72 = scmp.ne.s32.totalorder %s64, %s66
      %p73 = scmp.eq.s32.totalorder %s21, 1
      %p74 = por %p72, %p73
      %p75 = scmp.ne.s32.totalorder %s66, %s67
      %p76 = scmp.eq.s32.totalorder %s21, 0
      %p77 = por %p75, %p76
      %p78 = scmp.ne.s32.totalorder %s66, %s67
      %p79 = scmp.eq.s32.totalorder %s22, 1
      %p80 = por %p78, %p79
      %p82 = scmp.ne.s32.totalorder %s67, %s81
      %p83 = scmp.eq.s32.totalorder %s22, 0
      %p84 = por %p82, %p83
      %s86 = sadd.s32 %s85, 1
      %p89 = scmp.eq.s32.totalorder %s16, 1
      %p90 = scmp.ne.s32.totalorder %s85, %s87
      %p91 = scmp.eq.s32.totalorder %s16, 0
      %p92 = por %p90, %p91
      %p93 = scmp.ne.s32.totalorder %s85, %s87
      %p94 = scmp.eq.s32.totalorder %s21, 1
      %p95 = por %p93, %p94
      %p96 = scmp.ne.s32.totalorder %s87, %s88
      %p97 = scmp.eq.s32.totalorder %s21, 0
      %p98 = por %p96, %p97
      %p99 = scmp.ne.s32.totalorder %s87, %s88
      %p100 = scmp.eq.s32.totalorder %s22, 1
      %p101 = por %p99, %p100
      %p103 = scmp.ne.s32.totalorder %s88, %s102
      %p104 = scmp.eq.s32.totalorder %s22, 0
      %p105 = por %p103, %p104
      %s107 = sadd.s32 %s106, 1
      %p110 = scmp.eq.s32.totalorder %s16, 1
      %p111 = scmp.ne.s32.totalorder %s106, %s108
      %p112 = scmp.eq.s32.totalorder %s16, 0
      %p113 = por %p111, %p112
      %p114 = scmp.ne.s32.totalorder %s106, %s108
      %p115 = scmp.eq.s32.totalorder %s21, 1
      %p116 = por %p114, %p115
      %p117 = scmp.ne.s32.totalorder %s108, %s109
      %p118 = scmp.eq.s32.totalorder %s21, 0
      %p119 = por %p117, %p118
      %p120 = scmp.ne.s32.totalorder %s108, %s109
      %p121 = scmp.eq.s32.totalorder %s22, 1
      %p122 = por %p120, %p121
      %p124 = scmp.ne.s32.totalorder %s109, %s123
      %p125 = scmp.eq.s32.totalorder %s22, 0
      %p126 = por %p124, %p125
      %s128 = sadd.s32 %s127, 1
      %p131 = scmp.eq.s32.totalorder %s16, 1
      %p132 = scmp.ne.s32.totalorder %s127, %s129
      %p133 = scmp.eq.s32.totalorder %s16, 0
      %p134 = por %p132, %p133
      %p135 = scmp.ne.s32.totalorder %s127, %s129
      %p136 = scmp.eq.s32.totalorder %s21, 1
      %p137 = por %p135, %p136
      %p138 = scmp.ne.s32.totalorder %s129, %s130
      %p139 = scmp.eq.s32.totalorder %s21, 0
      %p140 = por %p138, %p139
      %p141 = scmp.ne.s32.totalorder %s129, %s130
      %p142 = scmp.eq.s32.totalorder %s22, 1
      %p143 = por %p141, %p142
      %p145 = scmp.ne.s32.totalorder %s130, %s144
      %p146 = scmp.eq.s32.totalorder %s22, 0
      %p147 = por %p145, %p146
      %s149 = sadd.s32 %s148, 1
      %p152 = scmp.eq.s32.totalorder %s16, 1
      %p153 = scmp.ne.s32.totalorder %s148, %s150
      %p154 = scmp.eq.s32.totalorder %s16, 0
      %p155 = por %p153, %p154
      %p156 = scmp.ne.s32.totalorder %s148, %s150
      %p157 = scmp.eq.s32.totalorder %s21, 1
      %p158 = por %p156, %p157
      %p159 = scmp.ne.s32.totalorder %s150, %s151
      %p160 = scmp.eq.s32.totalorder %s21, 0
      %p161 = por %p159, %p160
      %p162 = scmp.ne.s32.totalorder %s150, %s151
      %p163 = scmp.eq.s32.totalorder %s22, 1
      %p164 = por %p162, %p163
      %p166 = scmp.ne.s32.totalorder %s151, %s165
      %p167 = scmp.eq.s32.totalorder %s22, 0
      %p168 = por %p166, %p167
      %s170 = sadd.s32 %s169, 1
      %p173 = scmp.eq.s32.totalorder %s16, 1
      %p174 = scmp.ne.s32.totalorder %s169, %s171
      %p175 = scmp.eq.s32.totalorder %s16, 0
      %p176 = por %p174, %p175
      %p177 = scmp.ne.s32.totalorder %s169, %s171
      %p178 = scmp.eq.s32.totalorder %s21, 1
      %p179 = por %p177, %p178
      %p180 = scmp.ne.s32.totalorder %s171, %s172
      %p181 = scmp.eq.s32.totalorder %s21, 0
      %p182 = por %p180, %p181
      %p183 = scmp.ne.s32.totalorder %s171, %s172
      %p184 = scmp.eq.s32.totalorder %s22, 1
      %p185 = por %p183, %p184
      %p187 = scmp.ne.s32.totalorder %s172, %s186
      %p188 = scmp.eq.s32.totalorder %s22, 0
      %p189 = por %p187, %p188
      %s190 = ssub.s32 %s23, %s35
      %s191 = ssub.s32 %s24, %s31
      %s192 = sor.u32 %s190, %s191
      %p193 = scmp.eq.s32.totalorder %s192, 0
      %s195 = sadd.s32 %s194, 1
      %s196 = scalar_select %p193, %s194, %s195
      %p199 = pneg %p193
      %p200 = scmp.eq.s32.totalorder %s16, 1
      %p201 = por %p199, %p200
      %p202 = scmp.ne.s32.totalorder %s194, %s197
      %p203 = scmp.eq.s32.totalorder %s16, 0
      %p204 = por %p202, %p203
      %p205 = scmp.ne.s32.totalorder %s194, %s197
      %p206 = scmp.eq.s32.totalorder %s21, 1
      %p207 = por %p205, %p206
      %p208 = scmp.ne.s32.totalorder %s197, %s198
      %p209 = scmp.eq.s32.totalorder %s21, 0
      %p210 = por %p208, %p209
      %p211 = scmp.ne.s32.totalorder %s197, %s198
      %p212 = scmp.eq.s32.totalorder %s22, 1
      %p213 = por %p211, %p212
      %p215 = scmp.ne.s32.totalorder %s198, %s214
      %p216 = scmp.eq.s32.totalorder %s22, 0
      %p217 = por %p215, %p216
      %p218 = scmp.le.s32.totalorder 1, %s16
      %p219 = scmp.lt.s32.totalorder %s16, 3
      %p220 = pnand %p218, %p219
      %p221 = pneg %p220
      // Predicated region
      $region9: #{tpu_custom_call.1} parent=5 // pred_check
        _
      $region10: #{tpu_custom_call.1} parent=5 // pred_check_branch
        %223 = sbr.rel (%p220) target = $region12
      $region11: #{tpu_custom_call.1} parent=5 // pred_region
        %s224 = ssub.s32 %s16, 1
        // Predicated region
        $region13: #{tpu_custom_call.1} parent=11 // pred_check
          %p225 = pneg %p77
        $region14: #{tpu_custom_call.1} parent=11 // pred_check_branch
          %227 = sbr.rel (%p225) target = $region16
        $region15: #{tpu_custom_call.1} parent=11 // pred_region
          _
        $region16: #{tpu_custom_call.1} parent=11 // pred_fallthru
          _
        // Predicated region
        $region17: #{tpu_custom_call.1} parent=11 // pred_check
          %p228 = pneg %p98
        $region18: #{tpu_custom_call.1} parent=11 // pred_check_branch
          %230 = sbr.rel (%p228) target = $region20
        $region19: #{tpu_custom_call.1} parent=11 // pred_region
          _
        $region20: #{tpu_custom_call.1} parent=11 // pred_fallthru
          _
        // Predicated region
        $region21: #{tpu_custom_call.1} parent=11 // pred_check
          %p231 = pneg %p119
        $region22: #{tpu_custom_call.1} parent=11 // pred_check_branch
          %233 = sbr.rel (%p231) target = $region24
        $region23: #{tpu_custom_call.1} parent=11 // pred_region
          _
        $region24: #{tpu_custom_call.1} parent=11 // pred_fallthru
          _
        // Predicated region
        $region25: #{tpu_custom_call.1} parent=11 // pred_check
          %p234 = pneg %p140
        $region26: #{tpu_custom_call.1} parent=11 // pred_check_branch
          %236 = sbr.rel (%p234) target = $region28
        $region27: #{tpu_custom_call.1} parent=11 // pred_region
          _
        $region28: #{tpu_custom_call.1} parent=11 // pred_fallthru
          _
        // Predicated region
        $region29: #{tpu_custom_call.1} parent=11 // pred_check
          %p237 = pneg %p161
        $region30: #{tpu_custom_call.1} parent=11 // pred_check_branch
          %239 = sbr.rel (%p237) target = $region32
        $region31: #{tpu_custom_call.1} parent=11 // pred_region
          _
        $region32: #{tpu_custom_call.1} parent=11 // pred_fallthru
          _
        // Predicated region
        $region33: #{tpu_custom_call.1} parent=11 // pred_check
          %p240 = pneg %p182
        $region34: #{tpu_custom_call.1} parent=11 // pred_check_branch
          %242 = sbr.rel (%p240) target = $region36
        $region35: #{tpu_custom_call.1} parent=11 // pred_region
          _
        $region36: #{tpu_custom_call.1} parent=11 // pred_fallthru
          _
      $region12: #{tpu_custom_call.1} parent=5 // pred_fallthru
        _
      %p243 = scmp.lt.s32.totalorder %s16, 2
      // Predicated region
      $region37: #{tpu_custom_call.1} parent=5 // pred_check
        %p244 = pneg %p243
      $region38: #{tpu_custom_call.1} parent=5 // pred_check_branch
        %246 = sbr.rel (%p244) target = $region40
      $region39: #{tpu_custom_call.1} parent=5 // pred_region
        // Predicated region
        $region41: #{tpu_custom_call.1} parent=39 // pred_check
          %p247 = pneg %p50
        $region42: #{tpu_custom_call.1} parent=39 // pred_check_branch
          %249 = sbr.rel (%p247) target = $region44
        $region43: #{tpu_custom_call.1} parent=39 // pred_region
          %s250 = smul.u32 4, %s24
          %p251 = scmp.lt.s32.totalorder %s23, 1
          %s252 = scalar_select %p251, %s23, 1
          %p253 = scmp.lt.s32.totalorder %s250, 3
          %s254 = scalar_select %p253, %s250, 3
          %s255 = smul.addr %s252, 4
          %s256 = sadd.s32 %s254, %s255
          %s257 = smul.addr %s256, 4
          %s258 = scalar_lea.vmem %s0, %s257
          %s259 = smul.u32 4, %s24
        $region44: #{tpu_custom_call.1} parent=39 // pred_fallthru
          _
      $region40: #{tpu_custom_call.1} parent=5 // pred_fallthru
        _
      %p260 = scmp.le.s32.totalorder 1, %s16
      %p261 = scmp.lt.s32.totalorder %s16, 3
      %p262 = pnand %p260, %p261
      %p263 = pneg %p262
      // Predicated region
      $region45: #{tpu_custom_call.1} parent=5 // pred_check
        _
      $region46: #{tpu_custom_call.1} parent=5 // pred_check_branch
        %265 = sbr.rel (%p262) target = $region48
      $region47: #{tpu_custom_call.1} parent=5 // pred_region
        %s266 = ssub.s32 %s16, 1
        %s267 = smul.u32 4, %s26
        %p268 = scmp.lt.s32.totalorder %s25, 1
        %s269 = scalar_select %p268, %s25, 1
        %p270 = scmp.lt.s32.totalorder %s267, 3
        %s271 = scalar_select %p270, %s267, 3
        %s272 = smul.addr %s269, 4
        %s273 = sadd.s32 %s271, %s272
        %s274 = smul.addr %s273, 4
        %s275 = scalar_lea.vmem %s0, %s274
        %p276 = pneg %p56
        %p277 = pneg %p53
        %p278 = pneg %p77
        %p279 = pneg %p74
        %p280 = pneg %p98
        %p281 = pneg %p95
        %p282 = pneg %p119
        %p283 = pneg %p116
        %p284 = pneg %p140
        %p285 = pneg %p137
        %p286 = pneg %p161
        %p287 = pneg %p158
        %p288 = pneg %p182
        %p289 = pneg %p179
        %p290 = pneg %p210
        %p291 = pneg %p207
        %s292 = sand.u32 %s197, 1
        %s293 = scalar_lea.sflag [#allocation3], %s292
        %s294 = sand.u32 %s197, 1
        %s295 = smul.addr %s294, 128
        %s296 = scalar_lea.vmem [#allocation2], %s295
        %s297 = smul.u32 4, %s26
        %p298 = scmp.lt.s32.totalorder %s25, 1
        %s299 = scalar_select %p298, %s25, 1
        %p300 = scmp.lt.s32.totalorder %s297, 3
        %s301 = scalar_select %p300, %s297, 3
        %s302 = smul.addr %s299, 4
        %s303 = sadd.s32 %s301, %s302
        %s304 = smul.addr %s303, 4
        %s305 = scalar_lea.vmem %s0, %s304
        %s306 = smul.u32 4, %s26
        %s307 = smul.u32 4, %s26
        %v309 = vld [vmem:[%s305] sm:$0x77]
        %v310 = vld [vmem:[%s305 + $0x8] sm:$0x77]
        %v311 = vld [vmem:[%s1] sm:$0xff]
        %v312 = vld [vmem:[%s1 + $0x8] sm:$0xff]
        %v313 = vld [vmem:[%s1 + $0x10] sm:$0xff]
        %v314 = vld [vmem:[%s1 + $0x18] sm:$0xff]
        %v315 = vld [vmem:[%s2] sm:$0xff]
        %v316 = vld [vmem:[%s2 + $0x8] sm:$0xff]
        %v317 = vld [vmem:[%s2 + $0x10] sm:$0xff]
        %v318 = vld [vmem:[%s2 + $0x18] sm:$0xff]
        %320 = vset.pattern.permute.xlu0 0
        %321 = vperm.xlu0 %320, %v311
        %v322 = vpop.permute.xlu0 %321
        %325 = vset.pattern.permute.xlu0 0
        %326 = vperm.xlu0 %325, %v312
        %v327 = vpop.permute.xlu0 %326
        %330 = vset.pattern.permute.xlu0 0
        %331 = vperm.xlu0 %330, %v313
        %v332 = vpop.permute.xlu0 %331
        %335 = vset.pattern.permute.xlu0 0
        %336 = vperm.xlu0 %335, %v314
        %v337 = vpop.permute.xlu0 %336
        %v341 = vlaneseq
        %v342 = vshrl.u32 %v341, 7
        %v343 = vsub.s32 0, %v342
        %v344 = vrot.slane %v309, %v343
        %v345 = vlaneseq
        %v346 = vshrl.u32 %v345, 7
        %v347 = vsub.s32 4, %v346
        %v348 = vrot.slane %v309, %v347
        %v349 = vlaneseq
        %v350 = vshrl.u32 %v349, 7
        %v351 = vsub.s32 0, %v350
        %v352 = vrot.slane %v310, %v351
        %v353 = vlaneseq
        %v354 = vshrl.u32 %v353, 7
        %v355 = vsub.s32 4, %v354
        %v356 = vrot.slane %v310, %v355
        %v361 = vlaneseq
        %v362 = vshrl.u32 %v361, 7
        %v363 = vsub.s32 0, %v362
        %v364 = vrot.slane %v344, %v363
        %v365 = vlaneseq
        %v366 = vshrl.u32 %v365, 7
        %v367 = vsub.s32 0, %v366
        %v368 = vrot.slane %v348, %v367
        %v369 = vlaneseq
        %v370 = vshrl.u32 %v369, 7
        %v371 = vsub.s32 0, %v370
        %v372 = vrot.slane %v352, %v371
        %v373 = vlaneseq
        %v374 = vshrl.u32 %v373, 7
        %v375 = vsub.s32 0, %v374
        %v376 = vrot.slane %v356, %v375
        %v377 = vmul.f32 %v322, %v364
        %v378 = vmul.f32 %v322, %v368
        %v379 = vmul.f32 %v322, %v372
        %v380 = vmul.f32 %v322, %v376
        %v381 = vmul.f32 %v327, %v364
        %v382 = vmul.f32 %v327, %v368
        %v383 = vmul.f32 %v327, %v372
        %v384 = vmul.f32 %v327, %v376
        %v385 = vmul.f32 %v332, %v364
        %v386 = vmul.f32 %v332, %v368
        %v387 = vmul.f32 %v332, %v372
        %v388 = vmul.f32 %v332, %v376
        %v389 = vmul.f32 %v337, %v364
        %v390 = vmul.f32 %v337, %v368
        %v391 = vmul.f32 %v337, %v372
        %v392 = vmul.f32 %v337, %v376
        %394 = vset.pattern.permute.xlu0 0
        %395 = vperm.xlu0 %394, %v315
        %v396 = vpop.permute.xlu0 %395
        %399 = vset.pattern.permute.xlu0 0
        %400 = vperm.xlu0 %399, %v316
        %v401 = vpop.permute.xlu0 %400
        %404 = vset.pattern.permute.xlu0 0
        %405 = vperm.xlu0 %404, %v317
        %v406 = vpop.permute.xlu0 %405
        %409 = vset.pattern.permute.xlu0 0
        %410 = vperm.xlu0 %409, %v318
        %v411 = vpop.permute.xlu0 %410
        %v413 = vadd.f32 %v396, %v377
        %v414 = vadd.f32 %v396, %v378
        %v415 = vadd.f32 %v396, %v379
        %v416 = vadd.f32 %v396, %v380
        %v417 = vadd.f32 %v401, %v381
        %v418 = vadd.f32 %v401, %v382
        %v419 = vadd.f32 %v401, %v383
        %v420 = vadd.f32 %v401, %v384
        %v421 = vadd.f32 %v406, %v385
        %v422 = vadd.f32 %v406, %v386
        %v423 = vadd.f32 %v406, %v387
        %v424 = vadd.f32 %v406, %v388
        %v425 = vadd.f32 %v411, %v389
        %v426 = vadd.f32 %v411, %v390
        %v427 = vadd.f32 %v411, %v391
        %v428 = vadd.f32 %v411, %v392
        %429 = vset.pattern.permute.xlu0 1
        %430 = vperm.xlu0 %429, %v311
        %v431 = vpop.permute.xlu0 %430
        %433 = vset.pattern.permute.xlu0 1
        %434 = vperm.xlu0 %433, %v312
        %v435 = vpop.permute.xlu0 %434
        %437 = vset.pattern.permute.xlu0 1
        %438 = vperm.xlu0 %437, %v313
        %v439 = vpop.permute.xlu0 %438
        %441 = vset.pattern.permute.xlu0 1
        %442 = vperm.xlu0 %441, %v314
        %v443 = vpop.permute.xlu0 %442
        %v445 = vlaneseq
        %v446 = vshrl.u32 %v445, 7
        %v447 = vsub.s32 1, %v446
        %v448 = vrot.slane %v309, %v447
        %v449 = vlaneseq
        %v450 = vshrl.u32 %v449, 7
        %v451 = vsub.s32 5, %v450
        %v452 = vrot.slane %v309, %v451
        %v453 = vlaneseq
        %v454 = vshrl.u32 %v453, 7
        %v455 = vsub.s32 1, %v454
        %v456 = vrot.slane %v310, %v455
        %v457 = vlaneseq
        %v458 = vshrl.u32 %v457, 7
        %v459 = vsub.s32 5, %v458
        %v460 = vrot.slane %v310, %v459
        %v465 = vlaneseq
        %v466 = vshrl.u32 %v465, 7
        %v467 = vsub.s32 1, %v466
        %v468 = vrot.slane %v448, %v467
        %v469 = vlaneseq
        %v470 = vshrl.u32 %v469, 7
        %v471 = vsub.s32 1, %v470
        %v472 = vrot.slane %v452, %v471
        %v473 = vlaneseq
        %v474 = vshrl.u32 %v473, 7
        %v475 = vsub.s32 1, %v474
        %v476 = vrot.slane %v456, %v475
        %v477 = vlaneseq
        %v478 = vshrl.u32 %v477, 7
        %v479 = vsub.s32 1, %v478
        %v480 = vrot.slane %v460, %v479
        %v481 = vmul.f32 %v431, %v468
        %v482 = vmul.f32 %v431, %v472
        %v483 = vmul.f32 %v431, %v476
        %v484 = vmul.f32 %v431, %v480
        %v485 = vmul.f32 %v435, %v468
        %v486 = vmul.f32 %v435, %v472
        %v487 = vmul.f32 %v435, %v476
        %v488 = vmul.f32 %v435, %v480
        %v489 = vmul.f32 %v439, %v468
        %v490 = vmul.f32 %v439, %v472
        %v491 = vmul.f32 %v439, %v476
        %v492 = vmul.f32 %v439, %v480
        %v493 = vmul.f32 %v443, %v468
        %v494 = vmul.f32 %v443, %v472
        %v495 = vmul.f32 %v443, %v476
        %v496 = vmul.f32 %v443, %v480
        %v497 = vadd.f32 %v413, %v481
        %v498 = vadd.f32 %v414, %v482
        %v499 = vadd.f32 %v415, %v483
        %v500 = vadd.f32 %v416, %v484
        %v501 = vadd.f32 %v417, %v485
        %v502 = vadd.f32 %v418, %v486
        %v503 = vadd.f32 %v419, %v487
        %v504 = vadd.f32 %v420, %v488
        %v505 = vadd.f32 %v421, %v489
        %v506 = vadd.f32 %v422, %v490
        %v507 = vadd.f32 %v423, %v491
        %v508 = vadd.f32 %v424, %v492
        %v509 = vadd.f32 %v425, %v493
        %v510 = vadd.f32 %v426, %v494
        %v511 = vadd.f32 %v427, %v495
        %v512 = vadd.f32 %v428, %v496
        %513 = vset.pattern.permute.xlu0 2
        %514 = vperm.xlu0 %513, %v311
        %v515 = vpop.permute.xlu0 %514
        %517 = vset.pattern.permute.xlu0 2
        %518 = vperm.xlu0 %517, %v312
        %v519 = vpop.permute.xlu0 %518
        %521 = vset.pattern.permute.xlu0 2
        %522 = vperm.xlu0 %521, %v313
        %v523 = vpop.permute.xlu0 %522
        %525 = vset.pattern.permute.xlu0 2
        %526 = vperm.xlu0 %525, %v314
        %v527 = vpop.permute.xlu0 %526
        %v529 = vlaneseq
        %v530 = vshrl.u32 %v529, 7
        %v531 = vsub.s32 2, %v530
        %v532 = vrot.slane %v309, %v531
        %v533 = vlaneseq
        %v534 = vshrl.u32 %v533, 7
        %v535 = vsub.s32 6, %v534
        %v536 = vrot.slane %v309, %v535
        %v537 = vlaneseq
        %v538 = vshrl.u32 %v537, 7
        %v539 = vsub.s32 2, %v538
        %v540 = vrot.slane %v310, %v539
        %v541 = vlaneseq
        %v542 = vshrl.u32 %v541, 7
        %v543 = vsub.s32 6, %v542
        %v544 = vrot.slane %v310, %v543
        %v549 = vlaneseq
        %v550 = vshrl.u32 %v549, 7
        %v551 = vsub.s32 2, %v550
        %v552 = vrot.slane %v532, %v551
        %v553 = vlaneseq
        %v554 = vshrl.u32 %v553, 7
        %v555 = vsub.s32 2, %v554
        %v556 = vrot.slane %v536, %v555
        %v557 = vlaneseq
        %v558 = vshrl.u32 %v557, 7
        %v559 = vsub.s32 2, %v558
        %v560 = vrot.slane %v540, %v559
        %v561 = vlaneseq
        %v562 = vshrl.u32 %v561, 7
        %v563 = vsub.s32 2, %v562
        %v564 = vrot.slane %v544, %v563
        %v565 = vmul.f32 %v515, %v552
        %v566 = vmul.f32 %v515, %v556
        %v567 = vmul.f32 %v515, %v560
        %v568 = vmul.f32 %v515, %v564
        %v569 = vmul.f32 %v519, %v552
        %v570 = vmul.f32 %v519, %v556
        %v571 = vmul.f32 %v519, %v560
        %v572 = vmul.f32 %v519, %v564
        %v573 = vmul.f32 %v523, %v552
        %v574 = vmul.f32 %v523, %v556
        %v575 = vmul.f32 %v523, %v560
        %v576 = vmul.f32 %v523, %v564
        %v577 = vmul.f32 %v527, %v552
        %v578 = vmul.f32 %v527, %v556
        %v579 = vmul.f32 %v527, %v560
        %v580 = vmul.f32 %v527, %v564
        %v581 = vadd.f32 %v497, %v565
        %v582 = vadd.f32 %v498, %v566
        %v583 = vadd.f32 %v499, %v567
        %v584 = vadd.f32 %v500, %v568
        %v585 = vadd.f32 %v501, %v569
        %v586 = vadd.f32 %v502, %v570
        %v587 = vadd.f32 %v503, %v571
        %v588 = vadd.f32 %v504, %v572
        %v589 = vadd.f32 %v505, %v573
        %v590 = vadd.f32 %v506, %v574
        %v591 = vadd.f32 %v507, %v575
        %v592 = vadd.f32 %v508, %v576
        %v593 = vadd.f32 %v509, %v577
        %v594 = vadd.f32 %v510, %v578
        %v595 = vadd.f32 %v511, %v579
        %v596 = vadd.f32 %v512, %v580
        %v597 = vmax.f32 %v581, 0.0
        %v598 = vmax.f32 %v582, 0.0
        %v599 = vmax.f32 %v583, 0.0
        %v600 = vmax.f32 %v584, 0.0
        %v601 = vmax.f32 %v585, 0.0
        %v602 = vmax.f32 %v586, 0.0
        %v603 = vmax.f32 %v587, 0.0
        %v604 = vmax.f32 %v588, 0.0
        %v605 = vmax.f32 %v589, 0.0
        %v606 = vmax.f32 %v590, 0.0
        %v607 = vmax.f32 %v591, 0.0
        %v608 = vmax.f32 %v592, 0.0
        %v609 = vmax.f32 %v593, 0.0
        %v610 = vmax.f32 %v594, 0.0
        %v611 = vmax.f32 %v595, 0.0
        %v612 = vmax.f32 %v596, 0.0
        %v613 = vld [vmem:[%s3] sm:$0xf]
        %v614 = vld [vmem:[%s3 + $0x4] sm:$0xf]
        %v615 = vld [vmem:[%s3 + $0x8] sm:$0xf]
        %v616 = vld [vmem:[%s3 + $0xc] sm:$0xf]
        %v617 = vld [vmem:[%s3 + $0x10] sm:$0xf]
        %v618 = vld [vmem:[%s3 + $0x14] sm:$0xf]
        %v619 = vld [vmem:[%s3 + $0x18] sm:$0xf]
        %v620 = vld [vmem:[%s3 + $0x1c] sm:$0xf]
        %v621 = vpack.c.bf16 %v601, %v597
        %v622 = vpack.c.bf16 %v602, %v598
        %v623 = vpack.c.bf16 %v603, %v599
        %v624 = vpack.c.bf16 %v604, %v600
        %v625 = vpack.c.bf16 %v609, %v605
        %v626 = vpack.c.bf16 %v610, %v606
        %v627 = vpack.c.bf16 %v611, %v607
        %v628 = vpack.c.bf16 %v612, %v608
        %v629 = vld [vmem:[%s4] sm:$0xff]
        %v630 = vld [vmem:[%s4 + $0x8] sm:$0xff]
        %v631 = vld [vmem:[%s4 + $0x10] sm:$0xff]
        %v632 = vld [vmem:[%s4 + $0x18] sm:$0xff]
        %v633 = vld [vmem:[%s4 + $0x20] sm:$0xff]
        %v634 = vld [vmem:[%s4 + $0x28] sm:$0xff]
        %v635 = vld [vmem:[%s4 + $0x30] sm:$0xff]
        %v636 = vld [vmem:[%s4 + $0x38] sm:$0xff]
        %638 = vset.pattern.permute.xlu0 0
        %639 = vperm.xlu0 %638, %v629
        %v640 = vpop.permute.xlu0 %639
        %643 = vset.pattern.permute.xlu0 0
        %644 = vperm.xlu0 %643, %v630
        %v645 = vpop.permute.xlu0 %644
        %648 = vset.pattern.permute.xlu0 0
        %649 = vperm.xlu0 %648, %v631
        %v650 = vpop.permute.xlu0 %649
        %653 = vset.pattern.permute.xlu0 0
        %654 = vperm.xlu0 %653, %v632
        %v655 = vpop.permute.xlu0 %654
        %658 = vset.pattern.permute.xlu0 0
        %659 = vperm.xlu0 %658, %v633
        %v660 = vpop.permute.xlu0 %659
        %663 = vset.pattern.permute.xlu0 0
        %664 = vperm.xlu0 %663, %v634
        %v665 = vpop.permute.xlu0 %664
        %668 = vset.pattern.permute.xlu0 0
        %669 = vperm.xlu0 %668, %v635
        %v670 = vpop.permute.xlu0 %669
        %673 = vset.pattern.permute.xlu0 0
        %674 = vperm.xlu0 %673, %v636
        %v675 = vpop.permute.xlu0 %674
        %v685 = vunpack.c.l.b16 %v613
        %v686 = vunpack.c.l.b16 %v614
        %v687 = vunpack.c.l.b16 %v615
        %v688 = vunpack.c.l.b16 %v616
        %v689 = vunpack.c.l.b16 %v617
        %v690 = vunpack.c.l.b16 %v618
        %v691 = vunpack.c.l.b16 %v619
        %v692 = vunpack.c.l.b16 %v620
        %v693 = vpack.c.b16 %v686, %v685
        %v694 = vpack.c.b16 %v688, %v687
        %v695 = vpack.c.b16 %v690, %v689
        %v696 = vpack.c.b16 %v692, %v691
        %vm697 = vcmask 261120
        %v699 = vsel %vm697, %v693, 0
        %v702 = vsel %vm697, %v694, 0
        %v705 = vsel %vm697, %v695, 0
        %v708 = vsel %vm697, %v696, 0
        %710 = vmatprep.subr.bf16.mxu0 %v622
        %711 = vmatpush1.bf16.msra.mxu0 %v621
        %712 = vmatprep.subr.bf16.mxu0 %v626
        %713 = vmatpush1.bf16.msra.mxu0 %v625
        %714 = vmatprep.subr.bf16.mxu0 0
        %715 = vmatpush1.bf16.msra.mxu0 0
        %716 = vmatprep.subr.bf16.mxu0 0
        %717 = vmatpush1.bf16.msra.mxu0 0
        %718 = vmatprep.subr.bf16.mxu0 0
        %719 = vmatpush1.bf16.msra.mxu0 0
        %720 = vmatprep.subr.bf16.mxu0 0
        %721 = vmatpush1.bf16.msra.mxu0 0
        %722 = vmatprep.subr.bf16.mxu0 0
        %723 = vmatpush1.bf16.msra.mxu0 0
        %724 = vmatprep.subr.bf16.mxu0 0
        %725 = vmatpush1.bf16.msra.mxu0 0
        %726 = vmatprep.subr.bf16.mxu0 0
        %727 = vmatpush1.bf16.msra.mxu0 0
        %728 = vmatprep.subr.bf16.mxu0 0
        %729 = vmatpush1.bf16.msra.mxu0 0
        %730 = vmatprep.subr.bf16.mxu0 0
        %731 = vmatpush1.bf16.msra.mxu0 0
        %732 = vmatprep.subr.bf16.mxu0 0
        %733 = vmatpush1.bf16.msra.mxu0 0
        %734 = vmatprep.subr.bf16.mxu0 0
        %735 = vmatpush1.bf16.msra.mxu0 0
        %736 = vmatprep.subr.bf16.mxu0 0
        %737 = vmatpush1.bf16.msra.mxu0 0
        %738 = vmatprep.subr.bf16.mxu0 0
        %739 = vmatpush1.bf16.msra.mxu0 0
        %740 = vmatprep.subr.bf16.mxu0 0
        %741 = vmatpush1.bf16.msra.mxu0 0
        %742 = vmatprep.mubr.bf16.mxu0 0
        %743 = vmatmul.mubr.bf16.gmra.mrb[0].mxu0 %v699
        %v744 = vpop.f32.mrb[0].mxu0
        %v745 = vadd.f32 %v640, %v744
        %v746 = vpop.f32.mrb[0].mxu0
        %v747 = vadd.f32 %v640, %v746
        %v748 = vpop.f32.mrb[0].mxu0
        %v749 = vadd.f32 %v645, %v748
        %v750 = vpop.f32.mrb[0].mxu0
        %v751 = vadd.f32 %v645, %v750
        %752 = vmatprep.mubr.bf16.mxu0 0
        %753 = vmatmul.mubr.bf16.gmra.mrb[0].mxu0 %v702
        %v754 = vpop.f32.mrb[0].mxu0
        %v755 = vadd.f32 %v650, %v754
        %v756 = vpop.f32.mrb[0].mxu0
        %v757 = vadd.f32 %v650, %v756
        %v758 = vpop.f32.mrb[0].mxu0
        %v759 = vadd.f32 %v655, %v758
        %v760 = vpop.f32.mrb[0].mxu0
        %v761 = vadd.f32 %v655, %v760
        %762 = vmatprep.mubr.bf16.mxu0 0
        %763 = vmatmul.mubr.bf16.gmra.mrb[0].mxu0 %v705
        %v764 = vpop.f32.mrb[0].mxu0
        %v765 = vadd.f32 %v660, %v764
        %v766 = vpop.f32.mrb[0].mxu0
        %v767 = vadd.f32 %v660, %v766
        %v768 = vpop.f32.mrb[0].mxu0
        %v769 = vadd.f32 %v665, %v768
        %v770 = vpop.f32.mrb[0].mxu0
        %v771 = vadd.f32 %v665, %v770
        %772 = vmatprep.mubr.bf16.mxu0 0
        %773 = vmatmul.mubr.bf16.gmra.mrb[0].mxu0 %v708
        %v774 = vpop.f32.mrb[0].mxu0
        %v775 = vadd.f32 %v670, %v774
        %v776 = vpop.f32.mrb[0].mxu0
        %v777 = vadd.f32 %v670, %v776
        %v778 = vpop.f32.mrb[0].mxu0
        %v779 = vadd.f32 %v675, %v778
        %v780 = vpop.f32.mrb[0].mxu0
        %v781 = vadd.f32 %v675, %v780
        %782 = vdwg.mxu0
        %783 = vmatprep.subr.bf16.mxu0 %v624
        %784 = vmatpush1.bf16.msra.mxu0 %v623
        %785 = vmatprep.subr.bf16.mxu0 %v628
        %786 = vmatpush1.bf16.msra.mxu0 %v627
        %787 = vmatprep.subr.bf16.mxu0 0
        %788 = vmatpush1.bf16.msra.mxu0 0
        %789 = vmatprep.subr.bf16.mxu0 0
        %790 = vmatpush1.bf16.msra.mxu0 0
        %791 = vmatprep.subr.bf16.mxu0 0
        %792 = vmatpush1.bf16.msra.mxu0 0
        %793 = vmatprep.subr.bf16.mxu0 0
        %794 = vmatpush1.bf16.msra.mxu0 0
        %795 = vmatprep.subr.bf16.mxu0 0
        %796 = vmatpush1.bf16.msra.mxu0 0
        %797 = vmatprep.subr.bf16.mxu0 0
        %798 = vmatpush1.bf16.msra.mxu0 0
        %799 = vmatprep.subr.bf16.mxu0 0
        %800 = vmatpush1.bf16.msra.mxu0 0
        %801 = vmatprep.subr.bf16.mxu0 0
        %802 = vmatpush1.bf16.msra.mxu0 0
        %803 = vmatprep.subr.bf16.mxu0 0
        %804 = vmatpush1.bf16.msra.mxu0 0
        %805 = vmatprep.subr.bf16.mxu0 0
        %806 = vmatpush1.bf16.msra.mxu0 0
        %807 = vmatprep.subr.bf16.mxu0 0
        %808 = vmatpush1.bf16.msra.mxu0 0
        %809 = vmatprep.subr.bf16.mxu0 0
        %810 = vmatpush1.bf16.msra.mxu0 0
        %811 = vmatprep.subr.bf16.mxu0 0
        %812 = vmatpush1.bf16.msra.mxu0 0
        %813 = vmatprep.subr.bf16.mxu0 0
        %814 = vmatpush1.bf16.msra.mxu0 0
        %815 = vmatprep.mubr.bf16.mxu0 0
        %816 = vmatmul.mubr.bf16.gmra.mrb[0].mxu0 %v699
        %v817 = vpop.f32.mrb[0].mxu0
        %v818 = vadd.f32 %v640, %v817
        %v819 = vpop.f32.mrb[0].mxu0
        %v820 = vadd.f32 %v640, %v819
        %v821 = vpop.f32.mrb[0].mxu0
        %v822 = vadd.f32 %v645, %v821
        %v823 = vpop.f32.mrb[0].mxu0
        %v824 = vadd.f32 %v645, %v823
        %825 = vmatprep.mubr.bf16.mxu0 0
        %826 = vmatmul.mubr.bf16.gmra.mrb[0].mxu0 %v702
        %v827 = vpop.f32.mrb[0].mxu0
        %v828 = vadd.f32 %v650, %v827
        %v829 = vpop.f32.mrb[0].mxu0
        %v830 = vadd.f32 %v650, %v829
        %v831 = vpop.f32.mrb[0].mxu0
        %v832 = vadd.f32 %v655, %v831
        %v833 = vpop.f32.mrb[0].mxu0
        %v834 = vadd.f32 %v655, %v833
        %835 = vmatprep.mubr.bf16.mxu0 0
        %836 = vmatmul.mubr.bf16.gmra.mrb[0].mxu0 %v705
        %v837 = vpop.f32.mrb[0].mxu0
        %v838 = vadd.f32 %v660, %v837
        %v839 = vpop.f32.mrb[0].mxu0
        %v840 = vadd.f32 %v660, %v839
        %v841 = vpop.f32.mrb[0].mxu0
        %v842 = vadd.f32 %v665, %v841
        %v843 = vpop.f32.mrb[0].mxu0
        %v844 = vadd.f32 %v665, %v843
        %845 = vmatprep.mubr.bf16.mxu0 0
        %846 = vmatmul.mubr.bf16.gmra.mrb[0].mxu0 %v708
        %v847 = vpop.f32.mrb[0].mxu0
        %v848 = vadd.f32 %v670, %v847
        %v849 = vpop.f32.mrb[0].mxu0
        %v850 = vadd.f32 %v670, %v849
        %v851 = vpop.f32.mrb[0].mxu0
        %v852 = vadd.f32 %v675, %v851
        %v853 = vpop.f32.mrb[0].mxu0
        %v854 = vadd.f32 %v675, %v853
        %855 = vdwg.mxu0
        %v856 = vmax.f32 %v745, 0.0
        %v857 = vmax.f32 %v747, 0.0
        %v858 = vmax.f32 %v818, 0.0
        %v859 = vmax.f32 %v820, 0.0
        %v860 = vmax.f32 %v749, 0.0
        %v861 = vmax.f32 %v751, 0.0
        %v862 = vmax.f32 %v822, 0.0
        %v863 = vmax.f32 %v824, 0.0
        %v864 = vmax.f32 %v755, 0.0
        %v865 = vmax.f32 %v757, 0.0
        %v866 = vmax.f32 %v828, 0.0
        %v867 = vmax.f32 %v830, 0.0
        %v868 = vmax.f32 %v759, 0.0
        %v869 = vmax.f32 %v761, 0.0
        %v870 = vmax.f32 %v832, 0.0
        %v871 = vmax.f32 %v834, 0.0
        %v872 = vmax.f32 %v765, 0.0
        %v873 = vmax.f32 %v767, 0.0
        %v874 = vmax.f32 %v838, 0.0
        %v875 = vmax.f32 %v840, 0.0
        %v876 = vmax.f32 %v769, 0.0
        %v877 = vmax.f32 %v771, 0.0
        %v878 = vmax.f32 %v842, 0.0
        %v879 = vmax.f32 %v844, 0.0
        %v880 = vmax.f32 %v775, 0.0
        %v881 = vmax.f32 %v777, 0.0
        %v882 = vmax.f32 %v848, 0.0
        %v883 = vmax.f32 %v850, 0.0
        %v884 = vmax.f32 %v779, 0.0
        %v885 = vmax.f32 %v781, 0.0
        %v886 = vmax.f32 %v852, 0.0
        %v887 = vmax.f32 %v854, 0.0
        %v888 = vld [vmem:[%s5] sm:$0xf]
        %v889 = vld [vmem:[%s5 + $0x4] sm:$0xf]
        %v890 = vld [vmem:[%s5 + $0x8] sm:$0xf]
        %v891 = vld [vmem:[%s5 + $0xc] sm:$0xf]
        %v892 = vpack.c.bf16 %v860, %v856
        %v893 = vpack.c.bf16 %v861, %v857
        %v894 = vpack.c.bf16 %v862, %v858
        %v895 = vpack.c.bf16 %v863, %v859
        %v896 = vpack.c.bf16 %v868, %v864
        %v897 = vpack.c.bf16 %v869, %v865
        %v898 = vpack.c.bf16 %v870, %v866
        %v899 = vpack.c.bf16 %v871, %v867
        %v900 = vpack.c.bf16 %v876, %v872
        %v901 = vpack.c.bf16 %v877, %v873
        %v902 = vpack.c.bf16 %v878, %v874
        %v903 = vpack.c.bf16 %v879, %v875
        %v904 = vpack.c.bf16 %v884, %v880
        %v905 = vpack.c.bf16 %v885, %v881
        %v906 = vpack.c.bf16 %v886, %v882
        %v907 = vpack.c.bf16 %v887, %v883
        %v908 = vld [vmem:[%s6] sm:$0xff]
        %v909 = vld [vmem:[%s6 + $0x8] sm:$0xff]
        %v910 = vld [vmem:[%s6 + $0x10] sm:$0xff]
        %v911 = vld [vmem:[%s6 + $0x18] sm:$0xff]
        %913 = vset.pattern.permute.xlu0 0
        %914 = vperm.xlu0 %913, %v908
        %v915 = vpop.permute.xlu0 %914
        %918 = vset.pattern.permute.xlu0 0
        %919 = vperm.xlu0 %918, %v909
        %v920 = vpop.permute.xlu0 %919
        %923 = vset.pattern.permute.xlu0 0
        %924 = vperm.xlu0 %923, %v910
        %v925 = vpop.permute.xlu0 %924
        %928 = vset.pattern.permute.xlu0 0
        %929 = vperm.xlu0 %928, %v911
        %v930 = vpop.permute.xlu0 %929
        %v936 = vunpack.c.l.b16 %v888
        %v937 = vunpack.c.l.b16 %v889
        %v938 = vunpack.c.l.b16 %v890
        %v939 = vunpack.c.l.b16 %v891
        %v940 = vpack.c.b16 %v937, %v936
        %v941 = vpack.c.b16 %v939, %v938
        %vm942 = vcmask 523264
        %v944 = vsel %vm942, %v940, 0
        %v947 = vsel %vm942, %v941, 0
        %949 = vmatprep.subr.bf16.mxu0 %v893
        %950 = vmatpush1.bf16.msra.mxu0 %v892
        %951 = vmatprep.subr.bf16.mxu0 %v897
        %952 = vmatpush1.bf16.msra.mxu0 %v896
        %953 = vmatprep.subr.bf16.mxu0 %v901
        %954 = vmatpush1.bf16.msra.mxu0 %v900
        %955 = vmatprep.subr.bf16.mxu0 %v905
        %956 = vmatpush1.bf16.msra.mxu0 %v904
        %957 = vmatprep.subr.bf16.mxu0 0
        %958 = vmatpush1.bf16.msra.mxu0 0
        %959 = vmatprep.subr.bf16.mxu0 0
        %960 = vmatpush1.bf16.msra.mxu0 0
        %961 = vmatprep.subr.bf16.mxu0 0
        %962 = vmatpush1.bf16.msra.mxu0 0
        %963 = vmatprep.subr.bf16.mxu0 0
        %964 = vmatpush1.bf16.msra.mxu0 0
        %965 = vmatprep.subr.bf16.mxu0 0
        %966 = vmatpush1.bf16.msra.mxu0 0
        %967 = vmatprep.subr.bf16.mxu0 0
        %968 = vmatpush1.bf16.msra.mxu0 0
        %969 = vmatprep.subr.bf16.mxu0 0
        %970 = vmatpush1.bf16.msra.mxu0 0
        %971 = vmatprep.subr.bf16.mxu0 0
        %972 = vmatpush1.bf16.msra.mxu0 0
        %973 = vmatprep.subr.bf16.mxu0 0
        %974 = vmatpush1.bf16.msra.mxu0 0
        %975 = vmatprep.subr.bf16.mxu0 0
        %976 = vmatpush1.bf16.msra.mxu0 0
        %977 = vmatprep.subr.bf16.mxu0 0
        %978 = vmatpush1.bf16.msra.mxu0 0
        %979 = vmatprep.subr.bf16.mxu0 0
        %980 = vmatpush1.bf16.msra.mxu0 0
        %981 = vmatprep.mubr.bf16.mxu0 0
        %982 = vmatmul.mubr.bf16.gmra.mrb[0].mxu0 %v944
        %v983 = vpop.f32.mrb[0].mxu0
        %v984 = vadd.f32 %v915, %v983
        %v985 = vpop.f32.mrb[0].mxu0
        %v986 = vadd.f32 %v915, %v985
        %v987 = vpop.f32.mrb[0].mxu0
        %v988 = vadd.f32 %v920, %v987
        %v989 = vpop.f32.mrb[0].mxu0
        %v990 = vadd.f32 %v920, %v989
        %991 = vmatprep.mubr.bf16.mxu0 0
        %992 = vmatmul.mubr.bf16.gmra.mrb[0].mxu0 %v947
        %v993 = vpop.f32.mrb[0].mxu0
        %v994 = vadd.f32 %v925, %v993
        %v995 = vpop.f32.mrb[0].mxu0
        %v996 = vadd.f32 %v925, %v995
        %v997 = vpop.f32.mrb[0].mxu0
        %v998 = vadd.f32 %v930, %v997
        %v999 = vpop.f32.mrb[0].mxu0
        %v1000 = vadd.f32 %v930, %v999
        %1001 = vdwg.mxu0
        %1002 = vmatprep.subr.bf16.mxu0 %v895
        %1003 = vmatpush1.bf16.msra.mxu0 %v894
        %1004 = vmatprep.subr.bf16.mxu0 %v899
        %1005 = vmatpush1.bf16.msra.mxu0 %v898
        %1006 = vmatprep.subr.bf16.mxu0 %v903
        %1007 = vmatpush1.bf16.msra.mxu0 %v902
        %1008 = vmatprep.subr.bf16.mxu0 %v907
        %1009 = vmatpush1.bf16.msra.mxu0 %v906
        %1010 = vmatprep.subr.bf16.mxu0 0
        %1011 = vmatpush1.bf16.msra.mxu0 0
        %1012 = vmatprep.subr.bf16.mxu0 0
        %1013 = vmatpush1.bf16.msra.mxu0 0
        %1014 = vmatprep.subr.bf16.mxu0 0
        %1015 = vmatpush1.bf16.msra.mxu0 0
        %1016 = vmatprep.subr.bf16.mxu0 0
        %1017 = vmatpush1.bf16.msra.mxu0 0
        %1018 = vmatprep.subr.bf16.mxu0 0
        %1019 = vmatpush1.bf16.msra.mxu0 0
        %1020 = vmatprep.subr.bf16.mxu0 0
        %1021 = vmatpush1.bf16.msra.mxu0 0
        %1022 = vmatprep.subr.bf16.mxu0 0
        %1023 = vmatpush1.bf16.msra.mxu0 0
        %1024 = vmatprep.subr.bf16.mxu0 0
        %1025 = vmatpush1.bf16.msra.mxu0 0
        %1026 = vmatprep.subr.bf16.mxu0 0
        %1027 = vmatpush1.bf16.msra.mxu0 0
        %1028 = vmatprep.subr.bf16.mxu0 0
        %1029 = vmatpush1.bf16.msra.mxu0 0
        %1030 = vmatprep.subr.bf16.mxu0 0
        %1031 = vmatpush1.bf16.msra.mxu0 0
        %1032 = vmatprep.subr.bf16.mxu0 0
        %1033 = vmatpush1.bf16.msra.mxu0 0
        %1034 = vmatprep.mubr.bf16.mxu0 0
        %1035 = vmatmul.mubr.bf16.gmra.mrb[0].mxu0 %v944
        %v1036 = vpop.f32.mrb[0].mxu0
        %v1037 = vadd.f32 %v915, %v1036
        %v1038 = vpop.f32.mrb[0].mxu0
        %v1039 = vadd.f32 %v915, %v1038
        %v1040 = vpop.f32.mrb[0].mxu0
        %v1041 = vadd.f32 %v920, %v1040
        %v1042 = vpop.f32.mrb[0].mxu0
        %v1043 = vadd.f32 %v920, %v1042
        %1044 = vmatprep.mubr.bf16.mxu0 0
        %1045 = vmatmul.mubr.bf16.gmra.mrb[0].mxu0 %v947
        %v1046 = vpop.f32.mrb[0].mxu0
        %v1047 = vadd.f32 %v925, %v1046
        %v1048 = vpop.f32.mrb[0].mxu0
        %v1049 = vadd.f32 %v925, %v1048
        %v1050 = vpop.f32.mrb[0].mxu0
        %v1051 = vadd.f32 %v930, %v1050
        %v1052 = vpop.f32.mrb[0].mxu0
        %v1053 = vadd.f32 %v930, %v1052
        %1054 = vdwg.mxu0
        %1055 = vst [vmem:[%s296] sm:$0xff] %v984
        %1056 = vst [vmem:[%s296 + $0x8] sm:$0xff] %v986
        %1057 = vst [vmem:[%s296 + $0x10] sm:$0xff] %v1037
        %1058 = vst [vmem:[%s296 + $0x18] sm:$0xff] %v1039
        %1059 = vst [vmem:[%s296 + $0x20] sm:$0xff] %v988
        %1060 = vst [vmem:[%s296 + $0x28] sm:$0xff] %v990
        %1061 = vst [vmem:[%s296 + $0x30] sm:$0xff] %v1041
        %1062 = vst [vmem:[%s296 + $0x38] sm:$0xff] %v1043
        %1063 = vst [vmem:[%s296 + $0x40] sm:$0xff] %v994
        %1064 = vst [vmem:[%s296 + $0x48] sm:$0xff] %v996
        %1065 = vst [vmem:[%s296 + $0x50] sm:$0xff] %v1047
        %1066 = vst [vmem:[%s296 + $0x58] sm:$0xff] %v1049
        %1067 = vst [vmem:[%s296 + $0x60] sm:$0xff] %v998
        %1068 = vst [vmem:[%s296 + $0x68] sm:$0xff] %v1000
        %1069 = vst [vmem:[%s296 + $0x70] sm:$0xff] %v1051
        %1070 = vst [vmem:[%s296 + $0x78] sm:$0xff] %v1053
        %s1071 = sand.u32 %s197, 1
        %s1072 = scalar_lea.sflag [#allocation3], %s1071
        %s1073 = sand.u32 %s197, 1
        %s1074 = smul.addr %s1073, 128
        %s1075 = scalar_lea.vmem [#allocation2], %s1074
        // Predicated region
        $region49: #{tpu_custom_call.1} parent=47 // pred_check
          %p1076 = pneg %p207
        $region50: #{tpu_custom_call.1} parent=47 // pred_check_branch
          %1078 = sbr.rel (%p1076) target = $region52
        $region51: #{tpu_custom_call.1} parent=47 // pred_region
          %s1079 = smul.u32 4, %s26
          %s1081 = ssub.s32 2048, 2048
          %1082 = vsyncadd %s1072, %s1081
          %s1083 = smul.addr %s25, 16
          %s1084 = sadd.s32 %s1079, %s1083
          %s1085 = smul.addr %s1084, 128
          %s1086 = scalar_lea.hbm %s7, %s1085
          %s1087 = sshll.u32 %s1075, 4
          %s1088 = int_to_ptr.vmem [resolvable:$true] %s1087
          %1093 = dma.vmem_to_hbm [thread:$0]  %s1088, 2048, %s1086, %s1072, 512, 512, 32
        $region52: #{tpu_custom_call.1} parent=47 // pred_fallthru
          _
      $region48: #{tpu_custom_call.1} parent=5 // pred_fallthru
        _
      %p1094 = scmp.le.s32.totalorder 2, %s16
      // Predicated region
      $region53: #{tpu_custom_call.1} parent=5 // pred_check
        %p1095 = pneg %p1094
      $region54: #{tpu_custom_call.1} parent=5 // pred_check_branch
        %1097 = sbr.rel (%p1095) target = $region56
      $region55: #{tpu_custom_call.1} parent=5 // pred_region
        %s1098 = ssub.s32 %s16, 2
        // Predicated region
        $region57: #{tpu_custom_call.1} parent=55 // pred_check
          %p1099 = pneg %p213
        $region58: #{tpu_custom_call.1} parent=55 // pred_check_branch
          %1101 = sbr.rel (%p1099) target = $region60
        $region59: #{tpu_custom_call.1} parent=55 // pred_region
          %s1102 = sand.u32 %s198, 1
          %s1103 = scalar_lea.sflag [#allocation3], %s1102
          %s1104 = sand.u32 %s198, 1
          %s1105 = smul.addr %s1104, 128
          %s1106 = scalar_lea.vmem [#allocation2], %s1105
          %1107 = dma.done %s1103, 2048
        $region60: #{tpu_custom_call.1} parent=55 // pred_fallthru
          _
      $region56: #{tpu_custom_call.1} parent=5 // pred_fallthru
        _
    $region6: #{tpu_custom_call.1} parent=1 // loop_footer
      %s20 = sadd.s32 1, %s16
    $region7: #{tpu_custom_call.1} parent=1 // loop_footer_branch
      %15 = sbr.rel target = $region3
    $region8: #{tpu_custom_call.1} parent=1 // loop_exit
      _
    %1108 = vsyncpa [#allocation3], 1
    %s1109 = scalar_lea.sflag [#allocation3], 1
    %1110 = vsyncpa %s1109, 1

</llo_original>
